<compile_context>
chip_gen: v6e
topology: v6e:2x2x1
jax: 0.10.0
libtpu: 0.0.40
codegen_flags: <defaults>
</compile_context>

<pallas_src>
import functools

import jax
import jax.numpy as jnp
from jax.experimental import pallas as pl
from jax.experimental.pallas import tpu as pltpu


def _fold_bn_into_conv(conv_w, conv_b, gamma, beta, mean, var, eps=1e-5):
    """Fold eval-mode BatchNorm (+ conv bias) into conv weights and a shift.

    conv_w: (3, 3, Cin, Cout) HWIO.  Returns (w_scaled, shift) such that
        conv(x, w_scaled) + shift == BN(conv(x, w) + conv_b)   (exact in f32).
    """
    scale = gamma / jnp.sqrt(var + eps)                    # (Cout,)
    shift = beta + (conv_b - mean) * scale                 # (Cout,)
    return conv_w * scale[None, None, None, :], shift


def _banded_weight(w, width):
    """Fold kw taps + width-direction zero padding into a block-Toeplitz matrix.

    w: (kh=3, kw=3, Cin, Cout) HWIO.
    Returns T of shape (3*width*Cin, width*Cout) with
        T[kh*W*Cin + wi*Cin + c, wo*Cout + o] = w[kh, wi - wo + 1, c, o]
    (zero where the tap falls outside the kernel -> padding=1 along W).
    Built once in the wrapper — negligible cost at these sizes.
    """
    kh, kw, cin, cout = w.shape
    wi = jnp.arange(width)[:, None]
    wo = jnp.arange(width)[None, :]
    dw = wi - wo + (kw // 2)                               # (W, W)
    valid = (dw >= 0) & (dw < kw)
    t = w[:, jnp.clip(dw, 0, kw - 1), :, :]                # (kh, W, W, Cin, Cout)
    t = jnp.where(valid[None, :, :, None, None], t, 0.0)
    t = jnp.transpose(t, (0, 1, 3, 2, 4))                  # (kh, W, Cin, W, Cout)
    return t.reshape(kh * width * cin, width * cout)


def _conv_block_kernel(x_ref, w1_ref, b1_ref, w2_ref, b2_ref, out_ref,
                       xcat_ref, midcat_ref, *, B, H, negative_slope):
    """B images per grid step, both convs fused, one fat matmul per conv.

    x_ref      : (B, H, W*Cin)        flattened NHWC input rows (bf16)
    w1_ref     : (3*W*Cin, W*Cmid)    banded conv1 weight, BN1 scale folded in (bf16)
    b1_ref     : (1, W*Cmid)          folded conv1 bias + BN1 shift (f32)
    w2_ref     : (3*W*Cmid, W*Cout)   banded conv2 weight, BN2 scale folded in (bf16)
    b2_ref     : (1, W*Cout)          folded conv2 bias + BN2 shift (f32)
    out_ref    : (B, H, W*Cout)       output rows (input dtype)
    xcat_ref   : (B*H, 3*W*Cin)       VMEM im2col-along-H view of the conv1 input
    midcat_ref : (B*H, 3*W*Cmid)      VMEM im2col-along-H view of the conv1 activation
    """
    wcin = x_ref.shape[-1]
    wcmid = w1_ref.shape[-1]
    m = B * H

    def fill_bands(cat_ref, rows, wc):
        # cat_ref[r, kh*wc:(kh+1)*wc] = rows[r + kh - 1] within each image;
        # the out-of-range halo rows are zero -> padding=1 along H.
        # Only the halo rows are zeroed (not the whole scratch), every step,
        # because with a "parallel" grid axis each core has its own scratch.
        cat_ref[:, wc:2 * wc] = rows                       # centre tap: one dense store
        zrow = jnp.zeros((1, wc), cat_ref.dtype)
        for b in range(B):                                 # static, small B
            r0 = b * H
            # kh = 0 band (reads row h-1): zero halo at image top, shifted rows below.
            cat_ref[r0:r0 + 1, 0:wc] = zrow
            cat_ref[r0 + 1:r0 + H, 0:wc] = rows[r0:r0 + H - 1, :]
            # kh = 2 band (reads row h+1): shifted rows, zero halo at image bottom.
            cat_ref[r0:r0 + H - 1, 2 * wc:3 * wc] = rows[r0 + 1:r0 + H, :]
            cat_ref[r0 + H - 1:r0 + H, 2 * wc:3 * wc] = zrow

    def band_conv(cat_ref, w_ref, b_ref):
        # One fat MXU matmul: (B*H, 3*W*Cin) @ (3*W*Cin, W*Cout), f32 accumulate.
        acc = jnp.dot(cat_ref[...], w_ref[...], preferred_element_type=jnp.float32)
        y = acc + b_ref[...]                               # bias + BN shift (scale is in w)
        return jnp.where(y > 0, y, negative_slope * y)     # LeakyReLU(0.1)

    # ---- conv1 + BN1 + LeakyReLU ----
    x_rows = x_ref[...].reshape(m, wcin)
    fill_bands(xcat_ref, x_rows, wcin)
    y1 = band_conv(xcat_ref, w1_ref, b1_ref)

    # Dropout2d is the identity in eval mode.
    # TODO(synk): training-mode Dropout2d (per-channel mask) / batch-stat BN.

    # ---- conv2 + BN2 + LeakyReLU (intermediate stays resident in VMEM, bf16) ----
    fill_bands(midcat_ref, y1.astype(midcat_ref.dtype), wcmid)
    y2 = band_conv(midcat_ref, w2_ref, b2_ref)

    out_ref[...] = y2.reshape(B, H, -1).astype(out_ref.dtype)


def _choose_images_per_step(n, h, target_rows=128):
    """Images per grid step: aim for B*H >= ~128 MXU rows, but keep >= 2 grid
    steps when possible so the "parallel" grid axis can use both v7x cores."""
    divisors = [d for d in range(1, n + 1) if n % d == 0]
    cap = max(1, n // 2) if n >= 2 else 1
    candidates = [d for d in divisors if d <= cap] or [1]
    for d in candidates:                                   # smallest B hitting target
        if d * h >= target_rows:
            return d
    return candidates[-1]


def conv_block_forward(x_nchw, params, *, negative_slope=0.1,
                       compute_dtype=jnp.bfloat16, eps=1e-5):
    """Equivalent of ConvBlock.forward (eval mode) on an NCHW input."""
    n, cin, h, w = x_nchw.shape
    cmid = params["conv1_w"].shape[-1]
    cout = params["conv2_w"].shape[-1]

    w1f, shift1 = _fold_bn_into_conv(params["conv1_w"], params["conv1_b"],
                                     params["bn1_gamma"], params["bn1_beta"],
                                     params["bn1_mean"], params["bn1_var"], eps)
    w2f, shift2 = _fold_bn_into_conv(params["conv2_w"], params["conv2_b"],
                                     params["bn2_gamma"], params["bn2_beta"],
                                     params["bn2_mean"], params["bn2_var"], eps)

    # NCHW -> NHWC rows flattened to (W*Cin); one fused transpose+reshape+cast.
    x_rows = (jnp.transpose(x_nchw, (0, 2, 3, 1))
              .reshape(n, h, w * cin).astype(compute_dtype))

    w1 = _banded_weight(w1f, w).astype(compute_dtype)      # (3*W*Cin,  W*Cmid)
    w2 = _banded_weight(w2f, w).astype(compute_dtype)      # (3*W*Cmid, W*Cout)
    b1 = jnp.tile(shift1, w).reshape(1, w * cmid).astype(jnp.float32)
    b2 = jnp.tile(shift2, w).reshape(1, w * cout).astype(jnp.float32)

    bsz = _choose_images_per_step(n, h)
    grid = (n // bsz,)

    kernel = functools.partial(_conv_block_kernel, B=bsz, H=h,
                               negative_slope=negative_slope)

    # w1/b1/w2/b2 have constant index_maps so they are fetched only once.
    # TODO(synk): for large W*C, pin them to a single VMEM buffer with
    #             pipeline_mode=pl.Buffered(1) to avoid double-buffered copies.
    out_rows = pl.pallas_call(
        kernel,
        out_shape=jax.ShapeDtypeStruct((n, h, w * cout), x_nchw.dtype),
        grid=grid,
        in_specs=[
            pl.BlockSpec((bsz, h, w * cin), lambda i: (i, 0, 0)),
            pl.BlockSpec((3 * w * cin, w * cmid), lambda i: (0, 0)),
            pl.BlockSpec((1, w * cmid), lambda i: (0, 0)),
            pl.BlockSpec((3 * w * cmid, w * cout), lambda i: (0, 0)),
            pl.BlockSpec((1, w * cout), lambda i: (0, 0)),
        ],
        out_specs=pl.BlockSpec((bsz, h, w * cout), lambda i: (i, 0, 0)),
        scratch_shapes=[
            pltpu.VMEM((bsz * h, 3 * w * cin), compute_dtype),
            pltpu.VMEM((bsz * h, 3 * w * cmid), compute_dtype),
        ],
        compiler_params=pltpu.CompilerParams(
            dimension_semantics=("parallel",),
            vmem_limit_bytes=32 * 1024 * 1024),
    )(x_rows, w1, b1, w2, b2)

    # Contiguous (free) reshape, then back to the PyTorch NCHW interface.
    out_nhwc = out_rows.reshape(n, h, w, cout)
    return jnp.transpose(out_nhwc, (0, 3, 1, 2))


def _reference_forward(x_nchw, params, *, negative_slope=0.1,
                       compute_dtype=jnp.bfloat16, eps=1e-5):
    """Pure-JAX reference, numerics matched to the kernel (BN scale folded into
    bf16 weights, bf16 conv inputs, f32 accumulation + epilogue)."""
    x = jnp.transpose(x_nchw, (0, 2, 3, 1))

    def conv_bn_act(inp, conv_w, conv_b, gamma, beta, mean, var):
        w_scaled, shift = _fold_bn_into_conv(conv_w, conv_b, gamma, beta,
                                             mean, var, eps)
        y = jax.lax.conv_general_dilated(
            inp.astype(compute_dtype), w_scaled.astype(compute_dtype),
            window_strides=(1, 1), padding="SAME",
            dimension_numbers=("NHWC", "HWIO", "NHWC"),
            preferred_element_type=jnp.float32)
        y = y + shift
        return jnp.where(y > 0, y, negative_slope * y)

    y = conv_bn_act(x, params["conv1_w"], params["conv1_b"],
                    params["bn1_gamma"], params["bn1_beta"],
                    params["bn1_mean"], params["bn1_var"])
    y = conv_bn_act(y, params["conv2_w"], params["conv2_b"],
                    params["bn2_gamma"], params["bn2_beta"],
                    params["bn2_mean"], params["bn2_var"])
    return jnp.transpose(y, (0, 3, 1, 2)).astype(x_nchw.dtype)


def init_conv_block_params(key, in_channels, out_channels):
    """Deterministic synthetic parameters matching ConvBlock.__init__ shapes."""
    ks = jax.random.split(key, 8)

    def conv_w(k, cin, cout):
        fan_in = cin * 9
        return (jax.random.normal(k, (3, 3, cin, cout), jnp.float32)
                * (1.0 / jnp.sqrt(fan_in)))

    return {
        "conv1_w": conv_w(ks[0], in_channels, out_channels),
        "conv1_b": 0.01 * jax.random.normal(ks[1], (out_channels,), jnp.float32),
        "conv2_w": conv_w(ks[2], out_channels, out_channels),
        "conv2_b": 0.01 * jax.random.normal(ks[3], (out_channels,), jnp.float32),
        "bn1_gamma": 1.0 + 0.1 * jax.random.normal(ks[4], (out_channels,), jnp.float32),
        "bn1_beta": 0.1 * jax.random.normal(ks[5], (out_channels,), jnp.float32),
        "bn1_mean": jnp.zeros((out_channels,), jnp.float32),
        "bn1_var": jnp.ones((out_channels,), jnp.float32),
        "bn2_gamma": 1.0 + 0.1 * jax.random.normal(ks[6], (out_channels,), jnp.float32),
        "bn2_beta": 0.1 * jax.random.normal(ks[7], (out_channels,), jnp.float32),
        "bn2_mean": jnp.zeros((out_channels,), jnp.float32),
        "bn2_var": jnp.ones((out_channels,), jnp.float32),
    }


if __name__ == "__main__":
    key = jax.random.PRNGKey(0)
    k_x, k_p = jax.random.split(key)

    N, Cin, H, W = 2, 4, 16, 16
    Cout = 8
    x = jax.random.normal(k_x, (N, Cin, H, W), jnp.float32)
    params = init_conv_block_params(k_p, Cin, Cout)

    out = jax.block_until_ready(jax.jit(conv_block_forward)(x, params))
    assert out.shape == (N, Cout, H, W), out.shape
    assert bool(jnp.isfinite(out).all())

    ref = jax.block_until_ready(jax.jit(_reference_forward)(x, params))
    max_err = float(jnp.max(jnp.abs(out - ref)))
    assert jnp.allclose(out, ref, atol=5e-2, rtol=5e-2), max_err

    print("KERNEL_OK")
</pallas_src>

<mosaic_0001>
module attributes {stable_mosaic.version = 11 : i64} {
  func.func @_conv_block_kernel(%arg0: i32, %arg1: memref<1x16x64xbf16, #tpu.memory_space<vmem>>, %arg2: memref<192x128xbf16, #tpu.memory_space<vmem>>, %arg3: memref<1x128xf32, #tpu.memory_space<vmem>>, %arg4: memref<384x128xbf16, #tpu.memory_space<vmem>>, %arg5: memref<1x128xf32, #tpu.memory_space<vmem>>, %arg6: memref<1x16x128xf32, #tpu.memory_space<vmem>>, %arg7: memref<16x192xbf16, #tpu.memory_space<vmem>>, %arg8: memref<16x384xbf16, #tpu.memory_space<vmem>>) attributes {dimension_semantics = [#tpu.dimension_semantics<parallel>], iteration_bounds = array<i64: 2>, scalar_prefetch = 0 : i64, scratch_operands = 2 : i64, tpu.core_type = #tpu.core_type<tc>, window_params = [{transform_indices = @transform_0, window_bounds = array<i64: 1, 16, 64>}, {pipeline_mode = #tpu.pipeline_mode<synchronous>, transform_indices = @transform_1, window_bounds = array<i64: 192, 128>}, {pipeline_mode = #tpu.pipeline_mode<synchronous>, transform_indices = @transform_2, window_bounds = array<i64: 1, 128>}, {pipeline_mode = #tpu.pipeline_mode<synchronous>, transform_indices = @transform_3, window_bounds = array<i64: 384, 128>}, {pipeline_mode = #tpu.pipeline_mode<synchronous>, transform_indices = @transform_4, window_bounds = array<i64: 1, 128>}, {transform_indices = @transform_5, window_bounds = array<i64: 1, 16, 128>}]} {
    %c0 = arith.constant 0 : index
    %c0_0 = arith.constant 0 : index
    %c0_1 = arith.constant 0 : index
    %0 = vector.load %arg1[%c0, %c0_0, %c0_1] : memref<1x16x64xbf16, #tpu.memory_space<vmem>>, vector<1x16x64xbf16>
    %1 = vector.shape_cast %0 : vector<1x16x64xbf16> to vector<16x64xbf16>
    %c0_2 = arith.constant 0 : index
    %c64 = arith.constant 64 : index
    %2 = vector.load %arg7[%c0_2, %c64] : memref<16x192xbf16, #tpu.memory_space<vmem>>, vector<16x64xbf16>
    tpu.vector_store %arg7[%c0_2, %c64], %1 {strides = array<i32>} : memref<16x192xbf16, #tpu.memory_space<vmem>>, vector<16x64xbf16>,
    %cst = arith.constant 0.000000e+00 : bf16
    %3 = vector.broadcast %cst : bf16 to vector<1x64xbf16>
    %c0_3 = arith.constant 0 : index
    %c0_4 = arith.constant 0 : index
    %4 = vector.load %arg7[%c0_3, %c0_4] : memref<16x192xbf16, #tpu.memory_space<vmem>>, vector<1x64xbf16>
    tpu.vector_store %arg7[%c0_3, %c0_4], %3 {strides = array<i32>} : memref<16x192xbf16, #tpu.memory_space<vmem>>, vector<1x64xbf16>,
    %5 = vector.extract_strided_slice %1 {offsets = [0, 0], sizes = [15, 64], strides = [1, 1]} : vector<16x64xbf16> to vector<15x64xbf16>
    %c1 = arith.constant 1 : index
    %c0_5 = arith.constant 0 : index
    %6 = vector.load %arg7[%c1, %c0_5] : memref<16x192xbf16, #tpu.memory_space<vmem>>, vector<15x64xbf16>
    tpu.vector_store %arg7[%c1, %c0_5], %5 {strides = array<i32>} : memref<16x192xbf16, #tpu.memory_space<vmem>>, vector<15x64xbf16>,
    %7 = vector.extract_strided_slice %1 {offsets = [1, 0], sizes = [15, 64], strides = [1, 1]} : vector<16x64xbf16> to vector<15x64xbf16>
    %c0_6 = arith.constant 0 : index
    %c128 = arith.constant 128 : index
    %8 = vector.load %arg7[%c0_6, %c128] : memref<16x192xbf16, #tpu.memory_space<vmem>>, vector<15x64xbf16>
    tpu.vector_store %arg7[%c0_6, %c128], %7 {strides = array<i32>} : memref<16x192xbf16, #tpu.memory_space<vmem>>, vector<15x64xbf16>,
    %c15 = arith.constant 15 : index
    %c128_7 = arith.constant 128 : index
    %9 = vector.load %arg7[%c15, %c128_7] : memref<16x192xbf16, #tpu.memory_space<vmem>>, vector<1x64xbf16>
    tpu.vector_store %arg7[%c15, %c128_7], %3 {strides = array<i32>} : memref<16x192xbf16, #tpu.memory_space<vmem>>, vector<1x64xbf16>,
    %c0_8 = arith.constant 0 : index
    %c0_9 = arith.constant 0 : index
    %10 = vector.load %arg7[%c0_8, %c0_9] : memref<16x192xbf16, #tpu.memory_space<vmem>>, vector<16x192xbf16>
    %c0_10 = arith.constant 0 : index
    %c0_11 = arith.constant 0 : index
    %11 = vector.load %arg2[%c0_10, %c0_11] : memref<192x128xbf16, #tpu.memory_space<vmem>>, vector<192x128xbf16>
    %cst_12 = arith.constant dense<0.000000e+00> : vector<16x128xf32>
    %12 = tpu.matmul %10, %11, %cst_12 {dimension_numbers = #tpu.dot_dimension_numbers<[1], [0], [0], [1], [0, 0, 1, 1], [], []>} : vector<16x192xbf16>, vector<192x128xbf16>, vector<16x128xf32> -> vector<16x128xf32>
    %c0_13 = arith.constant 0 : index
    %c0_14 = arith.constant 0 : index
    %13 = vector.load %arg3[%c0_13, %c0_14] : memref<1x128xf32, #tpu.memory_space<vmem>>, vector<1x128xf32>
    %14 = vector.broadcast %13 : vector<1x128xf32> to vector<16x128xf32>
    %15 = arith.addf %12, %14 : vector<16x128xf32>
    %cst_15 = arith.constant 0.000000e+00 : f32
    %16 = vector.broadcast %cst_15 : f32 to vector<16x128xf32>
    %17 = arith.cmpf ogt, %15, %16 : vector<16x128xf32>
    %cst_16 = arith.constant 1.000000e-01 : f32
    %18 = vector.broadcast %cst_16 : f32 to vector<16x128xf32>
    %19 = arith.mulf %18, %15 : vector<16x128xf32>
    %20 = arith.select %17, %15, %19 : vector<16x128xi1>, vector<16x128xf32>
    %21 = arith.truncf %20 : vector<16x128xf32> to vector<16x128xbf16>
    %c0_17 = arith.constant 0 : index
    %c128_18 = arith.constant 128 : index
    %22 = vector.load %arg8[%c0_17, %c128_18] : memref<16x384xbf16, #tpu.memory_space<vmem>>, vector<16x128xbf16>
    tpu.vector_store %arg8[%c0_17, %c128_18], %21 {strides = array<i32>} : memref<16x384xbf16, #tpu.memory_space<vmem>>, vector<16x128xbf16>,
    %cst_19 = arith.constant 0.000000e+00 : bf16
    %23 = vector.broadcast %cst_19 : bf16 to vector<1x128xbf16>
    %c0_20 = arith.constant 0 : index
    %c0_21 = arith.constant 0 : index
    %24 = vector.load %arg8[%c0_20, %c0_21] : memref<16x384xbf16, #tpu.memory_space<vmem>>, vector<1x128xbf16>
    tpu.vector_store %arg8[%c0_20, %c0_21], %23 {strides = array<i32>} : memref<16x384xbf16, #tpu.memory_space<vmem>>, vector<1x128xbf16>,
    %25 = vector.extract_strided_slice %21 {offsets = [0, 0], sizes = [15, 128], strides = [1, 1]} : vector<16x128xbf16> to vector<15x128xbf16>
    %c1_22 = arith.constant 1 : index
    %c0_23 = arith.constant 0 : index
    %26 = vector.load %arg8[%c1_22, %c0_23] : memref<16x384xbf16, #tpu.memory_space<vmem>>, vector<15x128xbf16>
    tpu.vector_store %arg8[%c1_22, %c0_23], %25 {strides = array<i32>} : memref<16x384xbf16, #tpu.memory_space<vmem>>, vector<15x128xbf16>,
    %27 = vector.extract_strided_slice %21 {offsets = [1, 0], sizes = [15, 128], strides = [1, 1]} : vector<16x128xbf16> to vector<15x128xbf16>
    %c0_24 = arith.constant 0 : index
    %c256 = arith.constant 256 : index
    %28 = vector.load %arg8[%c0_24, %c256] : memref<16x384xbf16, #tpu.memory_space<vmem>>, vector<15x128xbf16>
    tpu.vector_store %arg8[%c0_24, %c256], %27 {strides = array<i32>} : memref<16x384xbf16, #tpu.memory_space<vmem>>, vector<15x128xbf16>,
    %c15_25 = arith.constant 15 : index
    %c256_26 = arith.constant 256 : index
    %29 = vector.load %arg8[%c15_25, %c256_26] : memref<16x384xbf16, #tpu.memory_space<vmem>>, vector<1x128xbf16>
    tpu.vector_store %arg8[%c15_25, %c256_26], %23 {strides = array<i32>} : memref<16x384xbf16, #tpu.memory_space<vmem>>, vector<1x128xbf16>,
    %c0_27 = arith.constant 0 : index
    %c0_28 = arith.constant 0 : index
    %30 = vector.load %arg8[%c0_27, %c0_28] : memref<16x384xbf16, #tpu.memory_space<vmem>>, vector<16x384xbf16>
    %c0_29 = arith.constant 0 : index
    %c0_30 = arith.constant 0 : index
    %31 = vector.load %arg4[%c0_29, %c0_30] : memref<384x128xbf16, #tpu.memory_space<vmem>>, vector<384x128xbf16>
    %cst_31 = arith.constant dense<0.000000e+00> : vector<16x128xf32>
    %32 = tpu.matmul %30, %31, %cst_31 {dimension_numbers = #tpu.dot_dimension_numbers<[1], [0], [0], [1], [0, 0, 1, 1], [], []>} : vector<16x384xbf16>, vector<384x128xbf16>, vector<16x128xf32> -> vector<16x128xf32>
    %c0_32 = arith.constant 0 : index
    %c0_33 = arith.constant 0 : index
    %33 = vector.load %arg5[%c0_32, %c0_33] : memref<1x128xf32, #tpu.memory_space<vmem>>, vector<1x128xf32>
    %34 = vector.broadcast %33 : vector<1x128xf32> to vector<16x128xf32>
    %35 = arith.addf %32, %34 : vector<16x128xf32>
    %cst_34 = arith.constant 0.000000e+00 : f32
    %36 = vector.broadcast %cst_34 : f32 to vector<16x128xf32>
    %37 = arith.cmpf ogt, %35, %36 : vector<16x128xf32>
    %cst_35 = arith.constant 1.000000e-01 : f32
    %38 = vector.broadcast %cst_35 : f32 to vector<16x128xf32>
    %39 = arith.mulf %38, %35 : vector<16x128xf32>
    %40 = arith.select %37, %35, %39 : vector<16x128xi1>, vector<16x128xf32>
    %41 = vector.shape_cast %40 : vector<16x128xf32> to vector<1x16x128xf32>
    %c0_36 = arith.constant 0 : index
    %c0_37 = arith.constant 0 : index
    %c0_38 = arith.constant 0 : index
    %42 = vector.load %arg6[%c0_36, %c0_37, %c0_38] : memref<1x16x128xf32, #tpu.memory_space<vmem>>, vector<1x16x128xf32>
    tpu.vector_store %arg6[%c0_36, %c0_37, %c0_38], %41 {strides = array<i32>} : memref<1x16x128xf32, #tpu.memory_space<vmem>>, vector<1x16x128xf32>,
    return
  }
  func.func @transform_0(%arg0: i32) -> (i32, i32, i32) {
    %c0_i32 = arith.constant 0 : i32
    %c0_i32_0 = arith.constant 0 : i32
    %c0_i32_1 = arith.constant 0 : i32
    return %arg0, %c0_i32, %c0_i32_0 : i32, i32, i32
  }
  func.func @transform_1(%arg0: i32) -> (i32, i32) {
    %c0_i32 = arith.constant 0 : i32
    %c0_i32_0 = arith.constant 0 : i32
    %c0_i32_1 = arith.constant 0 : i32
    return %c0_i32, %c0_i32_0 : i32, i32
  }
  func.func @transform_2(%arg0: i32) -> (i32, i32) {
    %c0_i32 = arith.constant 0 : i32
    %c0_i32_0 = arith.constant 0 : i32
    %c0_i32_1 = arith.constant 0 : i32
    return %c0_i32, %c0_i32_0 : i32, i32
  }
  func.func @transform_3(%arg0: i32) -> (i32, i32) {
    %c0_i32 = arith.constant 0 : i32
    %c0_i32_0 = arith.constant 0 : i32
    %c0_i32_1 = arith.constant 0 : i32
    return %c0_i32, %c0_i32_0 : i32, i32
  }
  func.func @transform_4(%arg0: i32) -> (i32, i32) {
    %c0_i32 = arith.constant 0 : i32
    %c0_i32_0 = arith.constant 0 : i32
    %c0_i32_1 = arith.constant 0 : i32
    return %c0_i32, %c0_i32_0 : i32, i32
  }
  func.func @transform_5(%arg0: i32) -> (i32, i32, i32) {
    %c0_i32 = arith.constant 0 : i32
    %c0_i32_0 = arith.constant 0 : i32
    %c0_i32_1 = arith.constant 0 : i32
    return %arg0, %c0_i32, %c0_i32_0 : i32, i32, i32
  }
}

</mosaic_0001>

<llo_original>
// kernel: tile.13
$region0: #{tile.13}
  #allocation0 [shape = 's32[1]{0}', space=sflag, size = 0x4, scoped, tag = 'scoped memory for tile.13']
  %s0 = inlined_call_operand.vmem [shape: f32[8], index: 0, kind: input, shape index: {}]
  %s1 = inlined_call_operand.vmem [shape: f32[16,8], index: 1, kind: output, shape index: {}]
  // Predicated region
  $region2: #{tile.13} parent=0 // pred_check
    _
  $region3: #{tile.13} parent=0 // pred_check_branch
    %3 = sbr.rel (0) target = $region5
  $region4: #{tile.13} parent=0 // pred_region
    _
  $region5: #{tile.13} parent=0 // pred_fallthru
    _
  %v4 = vld [vmem:[%s0] ss:$0 sm:$0xff]
  %5 = vst [vmem:[%s1] sm:$0xff] %v4
  %s6 = scalar_lea.vmem %s1, 8
  %7 = vst [vmem:[%s6] sm:$0xff] %v4

// kernel: tile.14
$region0: #{tile.14}
  %s0 = inlined_call_operand.vmem [shape: f32[16,8], index: 0, kind: input, shape index: {}]
  %s1 = inlined_call_operand.vmem [shape: f32[1,128], index: 1, kind: output, shape index: {}]
  $region1: #{tile.14} parent=0
    #allocation0 [shape = 'u8[4096]{0}', space=vmem, size = 0x1000, scoped, tag = 'scoped mem for output reshape']
    %v2 = vld [vmem:[%s0] sm:$0x1]
    %vm3 = vcmask 64512
    %4 = vst.msk [vmem:[#allocation0] sm:$0x1] %vm3, %v2
    %s5 = scalar_lea.vmem %s0, 15
    %v6 = vld [vmem:[%s5] sm:$0x1]
    %7 = vrot.lane.b32.xlu0 %v6, 120
    %v8 = vpop.permute.xlu0 %7
    %vm9 = vcmask 1048512
    %10 = vst.msk [vmem:[#allocation0] sm:$0x1] %vm9, %v8
    %s11 = scalar_lea.vmem %s0, 14
    %v12 = vld [vmem:[%s11] sm:$0x1]
    %13 = vrot.lane.b32.xlu0 %v12, 112
    %v14 = vpop.permute.xlu0 %13
    %vm15 = vcmask 982912
    %16 = vst.msk [vmem:[#allocation0] sm:$0x1] %vm15, %v14
    %s17 = scalar_lea.vmem %s0, 13
    %v18 = vld [vmem:[%s17] sm:$0x1]
    %19 = vrot.lane.b32.xlu0 %v18, 104
    %v20 = vpop.permute.xlu0 %19
    %vm21 = vcmask 917312
    %22 = vst.msk [vmem:[#allocation0] sm:$0x1] %vm21, %v20
    %s23 = scalar_lea.vmem %s0, 12
    %v24 = vld [vmem:[%s23] sm:$0x1]
    %25 = vrot.lane.b32.xlu0 %v24, 96
    %v26 = vpop.permute.xlu0 %25
    %vm27 = vcmask 851712
    %28 = vst.msk [vmem:[#allocation0] sm:$0x1] %vm27, %v26
    %s29 = scalar_lea.vmem %s0, 11
    %v30 = vld [vmem:[%s29] sm:$0x1]
    %31 = vrot.lane.b32.xlu0 %v30, 88
    %v32 = vpop.permute.xlu0 %31
    %vm33 = vcmask 786112
    %34 = vst.msk [vmem:[#allocation0] sm:$0x1] %vm33, %v32
    %s35 = scalar_lea.vmem %s0, 10
    %v36 = vld [vmem:[%s35] sm:$0x1]
    %37 = vrot.lane.b32.xlu0 %v36, 80
    %v38 = vpop.permute.xlu0 %37
    %vm39 = vcmask 720512
    %40 = vst.msk [vmem:[#allocation0] sm:$0x1] %vm39, %v38
    %s41 = scalar_lea.vmem %s0, 9
    %v42 = vld [vmem:[%s41] sm:$0x1]
    %43 = vrot.lane.b32.xlu0 %v42, 72
    %v44 = vpop.permute.xlu0 %43
    %vm45 = vcmask 654912
    %46 = vst.msk [vmem:[#allocation0] sm:$0x1] %vm45, %v44
    %s47 = scalar_lea.vmem %s0, 8
    %v48 = vld [vmem:[%s47] sm:$0x1]
    %49 = vrot.lane.b32.xlu0 %v48, 64
    %v50 = vpop.permute.xlu0 %49
    %vm51 = vcmask 589312
    %52 = vst.msk [vmem:[#allocation0] sm:$0x1] %vm51, %v50
    %s53 = scalar_lea.vmem %s0, 7
    %v54 = vld [vmem:[%s53] sm:$0x1]
    %55 = vrot.lane.b32.xlu0 %v54, 56
    %v56 = vpop.permute.xlu0 %55
    %vm57 = vcmask 523712
    %58 = vst.msk [vmem:[#allocation0] sm:$0x1] %vm57, %v56
    %s59 = scalar_lea.vmem %s0, 6
    %v60 = vld [vmem:[%s59] sm:$0x1]
    %61 = vrot.lane.b32.xlu0 %v60, 48
    %v62 = vpop.permute.xlu0 %61
    %vm63 = vcmask 458112
    %64 = vst.msk [vmem:[#allocation0] sm:$0x1] %vm63, %v62
    %s65 = scalar_lea.vmem %s0, 5
    %v66 = vld [vmem:[%s65] sm:$0x1]
    %67 = vrot.lane.b32.xlu0 %v66, 40
    %v68 = vpop.permute.xlu0 %67
    %vm69 = vcmask 392512
    %70 = vst.msk [vmem:[#allocation0] sm:$0x1] %vm69, %v68
    %s71 = scalar_lea.vmem %s0, 4
    %v72 = vld [vmem:[%s71] sm:$0x1]
    %73 = vrot.lane.b32.xlu0 %v72, 32
    %v74 = vpop.permute.xlu0 %73
    %vm75 = vcmask 326912
    %76 = vst.msk [vmem:[#allocation0] sm:$0x1] %vm75, %v74
    %s77 = scalar_lea.vmem %s0, 3
    %v78 = vld [vmem:[%s77] sm:$0x1]
    %79 = vrot.lane.b32.xlu0 %v78, 24
    %v80 = vpop.permute.xlu0 %79
    %vm81 = vcmask 261312
    %82 = vst.msk [vmem:[#allocation0] sm:$0x1] %vm81, %v80
    %s83 = scalar_lea.vmem %s0, 2
    %v84 = vld [vmem:[%s83] sm:$0x1]
    %85 = vrot.lane.b32.xlu0 %v84, 16
    %v86 = vpop.permute.xlu0 %85
    %vm87 = vcmask 195712
    %88 = vst.msk [vmem:[#allocation0] sm:$0x1] %vm87, %v86
    %s89 = scalar_lea.vmem %s0, 1
    %v90 = vld [vmem:[%s89] sm:$0x1]
    %91 = vrot.lane.b32.xlu0 %v90, 8
    %v92 = vpop.permute.xlu0 %91
    %vm93 = vcmask 130112
    %94 = vst.msk [vmem:[#allocation0] sm:$0x1] %vm93, %v92
    %s96 = sshll.u32 1, 1
    %s97 = ssub.s32 %s96, 1
    %v99 = vld [vmem:[#allocation0] sm:%s97]
    %s100 = sshll.u32 1, 1
    %s101 = ssub.s32 %s100, 1
    %102 = vst [vmem:[%s1] sm:%s101] %v99

// kernel: conv_block_forward.1
$region0: #{conv_block_forward.1}
  #allocation0 [shape = 'u32[]', space=smem, size = 0x4, offset = 0x4, fixed_abs, tag = 'smem constant byte address 0x4 - core index']
  #allocation1 [shape = 'u32[144,128]{1,0:T(1,128)}', space=vmem, size = 0x12000, scoped, tag = 'internal scratch']
  #allocation2 [shape = 'bf16[16,192]{1,0:T(8,128)(2,1)}', space=vmem, size = 0x2000, scoped, tag = 'scratch operand']
  #allocation3 [shape = 'bf16[16,384]{1,0:T(8,128)(2,1)}', space=vmem, size = 0x3000, scoped, tag = 'scratch operand']
  %s0 = inlined_call_operand.vmem [shape: bf16[2,16,64], index: 0, kind: input, shape index: {}]
  %s1 = inlined_call_operand.vmem [shape: bf16[192,128], index: 1, kind: input, shape index: {}]
  %s2 = inlined_call_operand.vmem [shape: f32[1,128], index: 2, kind: input, shape index: {}]
  %s3 = inlined_call_operand.vmem [shape: bf16[384,128], index: 3, kind: input, shape index: {}]
  %s4 = inlined_call_operand.vmem [shape: f32[1,128], index: 4, kind: input, shape index: {}]
  %s5 = inlined_call_operand.vmem [shape: f32[2,16,128], index: 5, kind: output, shape index: {}]
  %s6 = sld [smem:[#allocation0]]
  $region53: #{conv_block_forward.1} parent=0
    _
  %s8 = ssub.s32 1, %s6
  %s9 = scalar_select 0, %s8, %s6
  loop: start=0, step=1, limit=4
  $region2: #{conv_block_forward.1} parent=0 // loop_pre_header
    _
  $region3: #{conv_block_forward.1} parent=0 // loop_header
    %s11 = sphi 0, %s15
    %p12 = scmp.ge.s32.totalorder %s11, 4
    %s21 = sphi 0, %s23
    %s24 = sphi 0, %s21
    %s25 = sphi 0, %s24
    %s41 = sphi 0, %s25
    %s45 = sphi 0, %s45
    %s47 = sphi 0, %s45
    %s48 = sphi 0, %s47
    %s62 = sphi 0, %s48
    %s66 = sphi 0, %s66
    %s68 = sphi 0, %s66
    %s69 = sphi 0, %s68
    %s83 = sphi 0, %s69
    %s87 = sphi 0, %s87
    %s89 = sphi 0, %s87
    %s90 = sphi 0, %s89
    %s104 = sphi 0, %s90
    %s108 = sphi 0, %s108
    %s110 = sphi 0, %s108
    %s111 = sphi 0, %s110
    %s125 = sphi 0, %s111
    %s131 = sphi 0, %s133
    %s134 = sphi 0, %s131
    %s135 = sphi 0, %s134
    %s151 = sphi 0, %s135
  $region4: #{conv_block_forward.1} parent=0 // loop_header_branch
    %14 = sbr.rel (%p12) target = $region8
  $region5: #{conv_block_forward.1} parent=0 // loop_body
    %s16 = ssub.s32 %s11, 1
    %s17 = ssub.s32 %s11, 2
    %s18 = sadd.s32 %s11, 1
    %s19 = ssub.s32 %s11, %s18
    %p20 = scmp.eq.s32.totalorder %s19, 0
    %s22 = sadd.s32 %s21, 1
    %s23 = scalar_select %p20, %s21, %s22
    %p26 = pneg %p20
    %p27 = scmp.eq.s32.totalorder %s11, 1
    %p28 = por %p26, %p27
    %p29 = scmp.ne.s32.totalorder %s21, %s24
    %p30 = scmp.eq.s32.totalorder %s11, 0
    %p31 = por %p29, %p30
    %p32 = scmp.ne.s32.totalorder %s21, %s24
    %p33 = scmp.eq.s32.totalorder %s16, 1
    %p34 = por %p32, %p33
    %p35 = scmp.ne.s32.totalorder %s24, %s25
    %p36 = scmp.eq.s32.totalorder %s16, 0
    %p37 = por %p35, %p36
    %p38 = scmp.ne.s32.totalorder %s24, %s25
    %p39 = scmp.eq.s32.totalorder %s17, 1
    %p40 = por %p38, %p39
    %p42 = scmp.ne.s32.totalorder %s25, %s41
    %p43 = scmp.eq.s32.totalorder %s17, 0
    %p44 = por %p42, %p43
    %s46 = sadd.s32 %s45, 1
    %p49 = scmp.eq.s32.totalorder %s11, 1
    %p50 = scmp.ne.s32.totalorder %s45, %s47
    %p51 = scmp.eq.s32.totalorder %s11, 0
    %p52 = por %p50, %p51
    %p53 = scmp.ne.s32.totalorder %s45, %s47
    %p54 = scmp.eq.s32.totalorder %s16, 1
    %p55 = por %p53, %p54
    %p56 = scmp.ne.s32.totalorder %s47, %s48
    %p57 = scmp.eq.s32.totalorder %s16, 0
    %p58 = por %p56, %p57
    %p59 = scmp.ne.s32.totalorder %s47, %s48
    %p60 = scmp.eq.s32.totalorder %s17, 1
    %p61 = por %p59, %p60
    %p63 = scmp.ne.s32.totalorder %s48, %s62
    %p64 = scmp.eq.s32.totalorder %s17, 0
    %p65 = por %p63, %p64
    %s67 = sadd.s32 %s66, 1
    %p70 = scmp.eq.s32.totalorder %s11, 1
    %p71 = scmp.ne.s32.totalorder %s66, %s68
    %p72 = scmp.eq.s32.totalorder %s11, 0
    %p73 = por %p71, %p72
    %p74 = scmp.ne.s32.totalorder %s66, %s68
    %p75 = scmp.eq.s32.totalorder %s16, 1
    %p76 = por %p74, %p75
    %p77 = scmp.ne.s32.totalorder %s68, %s69
    %p78 = scmp.eq.s32.totalorder %s16, 0
    %p79 = por %p77, %p78
    %p80 = scmp.ne.s32.totalorder %s68, %s69
    %p81 = scmp.eq.s32.totalorder %s17, 1
    %p82 = por %p80, %p81
    %p84 = scmp.ne.s32.totalorder %s69, %s83
    %p85 = scmp.eq.s32.totalorder %s17, 0
    %p86 = por %p84, %p85
    %s88 = sadd.s32 %s87, 1
    %p91 = scmp.eq.s32.totalorder %s11, 1
    %p92 = scmp.ne.s32.totalorder %s87, %s89
    %p93 = scmp.eq.s32.totalorder %s11, 0
    %p94 = por %p92, %p93
    %p95 = scmp.ne.s32.totalorder %s87, %s89
    %p96 = scmp.eq.s32.totalorder %s16, 1
    %p97 = por %p95, %p96
    %p98 = scmp.ne.s32.totalorder %s89, %s90
    %p99 = scmp.eq.s32.totalorder %s16, 0
    %p100 = por %p98, %p99
    %p101 = scmp.ne.s32.totalorder %s89, %s90
    %p102 = scmp.eq.s32.totalorder %s17, 1
    %p103 = por %p101, %p102
    %p105 = scmp.ne.s32.totalorder %s90, %s104
    %p106 = scmp.eq.s32.totalorder %s17, 0
    %p107 = por %p105, %p106
    %s109 = sadd.s32 %s108, 1
    %p112 = scmp.eq.s32.totalorder %s11, 1
    %p113 = scmp.ne.s32.totalorder %s108, %s110
    %p114 = scmp.eq.s32.totalorder %s11, 0
    %p115 = por %p113, %p114
    %p116 = scmp.ne.s32.totalorder %s108, %s110
    %p117 = scmp.eq.s32.totalorder %s16, 1
    %p118 = por %p116, %p117
    %p119 = scmp.ne.s32.totalorder %s110, %s111
    %p120 = scmp.eq.s32.totalorder %s16, 0
    %p121 = por %p119, %p120
    %p122 = scmp.ne.s32.totalorder %s110, %s111
    %p123 = scmp.eq.s32.totalorder %s17, 1
    %p124 = por %p122, %p123
    %p126 = scmp.ne.s32.totalorder %s111, %s125
    %p127 = scmp.eq.s32.totalorder %s17, 0
    %p128 = por %p126, %p127
    %s129 = ssub.s32 %s11, %s18
    %p130 = scmp.eq.s32.totalorder %s129, 0
    %s132 = sadd.s32 %s131, 1
    %s133 = scalar_select %p130, %s131, %s132
    %p136 = pneg %p130
    %p137 = scmp.eq.s32.totalorder %s11, 1
    %p138 = por %p136, %p137
    %p139 = scmp.ne.s32.totalorder %s131, %s134
    %p140 = scmp.eq.s32.totalorder %s11, 0
    %p141 = por %p139, %p140
    %p142 = scmp.ne.s32.totalorder %s131, %s134
    %p143 = scmp.eq.s32.totalorder %s16, 1
    %p144 = por %p142, %p143
    %p145 = scmp.ne.s32.totalorder %s134, %s135
    %p146 = scmp.eq.s32.totalorder %s16, 0
    %p147 = por %p145, %p146
    %p148 = scmp.ne.s32.totalorder %s134, %s135
    %p149 = scmp.eq.s32.totalorder %s17, 1
    %p150 = por %p148, %p149
    %p152 = scmp.ne.s32.totalorder %s135, %s151
    %p153 = scmp.eq.s32.totalorder %s17, 0
    %p154 = por %p152, %p153
    %p155 = scmp.le.s32.totalorder 1, %s11
    %p156 = scmp.lt.s32.totalorder %s11, 3
    %p157 = pnand %p155, %p156
    %p158 = pneg %p157
    // Predicated region
    $region9: #{conv_block_forward.1} parent=5 // pred_check
      _
    $region10: #{conv_block_forward.1} parent=5 // pred_check_branch
      %160 = sbr.rel (%p157) target = $region12
    $region11: #{conv_block_forward.1} parent=5 // pred_region
      %s161 = ssub.s32 %s11, 1
      // Predicated region
      $region13: #{conv_block_forward.1} parent=11 // pred_check
        %p162 = pneg %p58
      $region14: #{conv_block_forward.1} parent=11 // pred_check_branch
        %164 = sbr.rel (%p162) target = $region16
      $region15: #{conv_block_forward.1} parent=11 // pred_region
        _
      $region16: #{conv_block_forward.1} parent=11 // pred_fallthru
        _
      // Predicated region
      $region17: #{conv_block_forward.1} parent=11 // pred_check
        %p165 = pneg %p79
      $region18: #{conv_block_forward.1} parent=11 // pred_check_branch
        %167 = sbr.rel (%p165) target = $region20
      $region19: #{conv_block_forward.1} parent=11 // pred_region
        _
      $region20: #{conv_block_forward.1} parent=11 // pred_fallthru
        _
      // Predicated region
      $region21: #{conv_block_forward.1} parent=11 // pred_check
        %p168 = pneg %p100
      $region22: #{conv_block_forward.1} parent=11 // pred_check_branch
        %170 = sbr.rel (%p168) target = $region24
      $region23: #{conv_block_forward.1} parent=11 // pred_region
        _
      $region24: #{conv_block_forward.1} parent=11 // pred_fallthru
        _
      // Predicated region
      $region25: #{conv_block_forward.1} parent=11 // pred_check
        %p171 = pneg %p121
      $region26: #{conv_block_forward.1} parent=11 // pred_check_branch
        %173 = sbr.rel (%p171) target = $region28
      $region27: #{conv_block_forward.1} parent=11 // pred_region
        _
      $region28: #{conv_block_forward.1} parent=11 // pred_fallthru
        _
    $region12: #{conv_block_forward.1} parent=5 // pred_fallthru
      _
    %p174 = scmp.lt.s32.totalorder %s11, 2
    // Predicated region
    $region29: #{conv_block_forward.1} parent=5 // pred_check
      %p175 = pneg %p174
    $region30: #{conv_block_forward.1} parent=5 // pred_check_branch
      %177 = sbr.rel (%p175) target = $region32
    $region31: #{conv_block_forward.1} parent=5 // pred_region
      // Predicated region
      $region33: #{conv_block_forward.1} parent=31 // pred_check
        %p178 = pneg %p31
      $region34: #{conv_block_forward.1} parent=31 // pred_check_branch
        %180 = sbr.rel (%p178) target = $region36
      $region35: #{conv_block_forward.1} parent=31 // pred_region
        %p181 = scmp.lt.s32.totalorder %s11, 1
        %s182 = scalar_select %p181, %s11, 1
        %s183 = smul.addr %s182, 2
        %s184 = smul.addr %s183, 4
        %s185 = scalar_lea.vmem %s0, %s184
      $region36: #{conv_block_forward.1} parent=31 // pred_fallthru
        _
    $region32: #{conv_block_forward.1} parent=5 // pred_fallthru
      _
    %p186 = scmp.le.s32.totalorder 1, %s11
    %p187 = scmp.lt.s32.totalorder %s11, 3
    %p188 = pnand %p186, %p187
    %p189 = pneg %p188
    // Predicated region
    $region37: #{conv_block_forward.1} parent=5 // pred_check
      _
    $region38: #{conv_block_forward.1} parent=5 // pred_check_branch
      %191 = sbr.rel (%p188) target = $region40
    $region39: #{conv_block_forward.1} parent=5 // pred_region
      %s192 = ssub.s32 %s11, 1
      %p193 = scmp.lt.s32.totalorder %s16, 1
      %s194 = scalar_select %p193, %s16, 1
      %s195 = smul.addr %s194, 2
      %s196 = smul.addr %s195, 4
      %s197 = scalar_lea.vmem %s0, %s196
      %p198 = pneg %p37
      %p199 = pneg %p34
      %p200 = pneg %p58
      %p201 = pneg %p55
      %p202 = pneg %p79
      %p203 = pneg %p76
      %p204 = pneg %p100
      %p205 = pneg %p97
      %p206 = pneg %p121
      %p207 = pneg %p118
      %p208 = pneg %p147
      %p209 = pneg %p144
      %p210 = scmp.lt.s32.totalorder %s16, 1
      %s211 = scalar_select %p210, %s16, 1
      %s212 = smul.addr %s211, 2
      %s213 = smul.addr %s212, 8
      %s214 = scalar_lea.vmem %s5, %s213
      %p215 = scmp.lt.s32.totalorder %s16, 1
      %s216 = scalar_select %p215, %s16, 1
      %s217 = smul.addr %s216, 2
      %s218 = smul.addr %s217, 4
      %s219 = scalar_lea.vmem %s0, %s218
      %p220 = scmp.lt.s32.totalorder %s16, 1
      %s221 = scalar_select %p220, %s16, 1
      %s222 = smul.addr %s221, 2
      %s223 = smul.addr %s222, 8
      %s224 = scalar_lea.vmem %s5, %s223
      %v226 = vld [vmem:[%s219] sm:$0xf]
      %v227 = vld [vmem:[%s219 + $0x4] sm:$0xf]
      %230 = vrot.lane.b32.xlu0 %v226, 64
      %v231 = vpop.permute.xlu0 %230
      %232 = vrot.lane.b32.xlu0 %v227, 64
      %v233 = vpop.permute.xlu0 %232
      %vm236 = vcmask 1043968
      %237 = vst.msk [vmem:[#allocation2] sm:$0xf] %vm236, %v231
      %238 = vst.msk [vmem:[#allocation2 + $0x8] sm:$0xf] %vm236, %v233
      %vm239 = vcmask 516096
      %vm240 = vsmask.f32 256
      %vm241 = vmand %vm239, %vm240
      %v242 = vld [vmem:[#allocation2] sm:$0x1]
      %v243 = vsel %vm241, 0, %v242
      %244 = vst [vmem:[#allocation2] sm:$0x1] %v243
      %vm245 = vsmask.f32 4368
      %vm246 = vmor %vm240, %vm245
      %v248 = vshrl.u32 %v226, 16
      %v250 = vrot.slane %v248, 7
      %v251 = vshll.u32 %v226, 16
      %v253 = vor.u32 %v250, %v251
      %v254 = vrot.slane %v250, 4
      %v256 = vshrl.u32 %v227, 16
      %v258 = vrot.slane %v256, 7
      %v259 = vshll.u32 %v227, 16
      %v261 = vor.u32 %v258, %v259
      %v262 = vsel %vm246, %v254, %v261
      %vm265 = vcmask 519168
      %vm266 = vsmask.f32 7938
      %vm267 = vmand %vm265, %vm266
      %v268 = vld [vmem:[#allocation2] sm:$0xf]
      %v269 = vsel %vm267, %v253, %v268
      %270 = vst [vmem:[#allocation2] sm:$0xf] %v269
      %vm271 = vcmask 519168
      %272 = vst.msk [vmem:[#allocation2 + $0x8] sm:$0xf] %vm271, %v262
      %vm273 = vsmask.f32 3328
      %vm274 = vsmask.f32 7440
      %vm275 = vmor %vm273, %vm274
      %v276 = vrot.slane %v248, 4
      %v277 = vrot.slane %v251, 5
      %v278 = vor.u32 %v276, %v277
      %v279 = vrot.slane %v278, 4
      %v280 = vrot.slane %v259, 5
      %v281 = vsel %vm275, %v279, %v280
      %v282 = vrot.slane %v256, 4
      %v283 = vor.u32 %v282, %v280
      %v284 = vrot.slane %v283, 4
      %287 = vst.msk [vmem:[#allocation2 + $0x4] sm:$0xf] %vm271, %v281
      %vm288 = vmand %vm265, %vm273
      %v289 = vld [vmem:[#allocation2 + $0xc] sm:$0xf]
      %v290 = vsel %vm288, %v284, %v289
      %291 = vst [vmem:[#allocation2 + $0xc] sm:$0xf] %v290
      %vm292 = vcmask 519171
      %vm293 = vsmask.f32 7950
      %vm294 = vmand %vm292, %vm293
      %v295 = vld [vmem:[#allocation2 + $0xc] sm:$0x8]
      %v296 = vsel %vm294, 0, %v295
      %297 = vst [vmem:[#allocation2 + $0xc] sm:$0x8] %v296
      %v298 = vld [vmem:[#allocation2] sm:$0xff]
      %v299 = vld [vmem:[#allocation2 + $0x8] sm:$0xff]
      %v300 = vld [vmem:[%s1] sm:$0xf]
      %v301 = vld [vmem:[%s1 + $0x4] sm:$0xf]
      %v302 = vld [vmem:[%s1 + $0x8] sm:$0xf]
      %v303 = vld [vmem:[%s1 + $0xc] sm:$0xf]
      %v304 = vld [vmem:[%s1 + $0x10] sm:$0xf]
      %v305 = vld [vmem:[%s1 + $0x14] sm:$0xf]
      %v306 = vld [vmem:[%s1 + $0x18] sm:$0xf]
      %v307 = vld [vmem:[%s1 + $0x1c] sm:$0xf]
      %v308 = vld [vmem:[%s1 + $0x20] sm:$0xf]
      %v309 = vld [vmem:[%s1 + $0x24] sm:$0xf]
      %v310 = vld [vmem:[%s1 + $0x28] sm:$0xf]
      %v311 = vld [vmem:[%s1 + $0x2c] sm:$0xf]
      %v312 = vld [vmem:[%s1 + $0x30] sm:$0xf]
      %v313 = vld [vmem:[%s1 + $0x34] sm:$0xf]
      %v314 = vld [vmem:[%s1 + $0x38] sm:$0xf]
      %v315 = vld [vmem:[%s1 + $0x3c] sm:$0xf]
      %v316 = vld [vmem:[%s1 + $0x40] sm:$0xf]
      %v317 = vld [vmem:[%s1 + $0x44] sm:$0xf]
      %v318 = vld [vmem:[%s1 + $0x48] sm:$0xf]
      %v319 = vld [vmem:[%s1 + $0x4c] sm:$0xf]
      %v320 = vld [vmem:[%s1 + $0x50] sm:$0xf]
      %v321 = vld [vmem:[%s1 + $0x54] sm:$0xf]
      %v322 = vld [vmem:[%s1 + $0x58] sm:$0xf]
      %v323 = vld [vmem:[%s1 + $0x5c] sm:$0xf]
      %v324 = vld [vmem:[%s2] sm:$0x1]
      %v326 = vlaneseq
      %v327 = vshrl.u32 %v326, 7
      %v328 = vsub.s32 0, %v327
      %v329 = vrot.slane %v324, %v328
      %v333 = vunpack.c.l.b16 %v298
      %v334 = vunpack.c.h.b16 %v298
      %v335 = vunpack.c.l.b16 %v299
      %v336 = vunpack.c.h.b16 %v299
      %v337 = vpack.c.b16 %v335, %v333
      %v338 = vpack.c.b16 %v336, %v334
      %v364 = vunpack.c.l.b16 %v300
      %v365 = vunpack.c.l.b16 %v301
      %v366 = vunpack.c.l.b16 %v302
      %v367 = vunpack.c.l.b16 %v303
      %v368 = vunpack.c.l.b16 %v304
      %v369 = vunpack.c.l.b16 %v305
      %v370 = vunpack.c.l.b16 %v306
      %v371 = vunpack.c.l.b16 %v307
      %v372 = vunpack.c.l.b16 %v308
      %v373 = vunpack.c.l.b16 %v309
      %v374 = vunpack.c.l.b16 %v310
      %v375 = vunpack.c.l.b16 %v311
      %v376 = vunpack.c.l.b16 %v312
      %v377 = vunpack.c.l.b16 %v313
      %v378 = vunpack.c.l.b16 %v314
      %v379 = vunpack.c.l.b16 %v315
      %v380 = vunpack.c.l.b16 %v316
      %v381 = vunpack.c.l.b16 %v317
      %v382 = vunpack.c.l.b16 %v318
      %v383 = vunpack.c.l.b16 %v319
      %v384 = vunpack.c.l.b16 %v320
      %v385 = vunpack.c.l.b16 %v321
      %v386 = vunpack.c.l.b16 %v322
      %v387 = vunpack.c.l.b16 %v323
      %v388 = vpack.c.b16 %v365, %v364
      %v389 = vpack.c.b16 %v367, %v366
      %v390 = vpack.c.b16 %v369, %v368
      %v391 = vpack.c.b16 %v371, %v370
      %v392 = vpack.c.b16 %v373, %v372
      %v393 = vpack.c.b16 %v375, %v374
      %v394 = vpack.c.b16 %v377, %v376
      %v395 = vpack.c.b16 %v379, %v378
      %v396 = vpack.c.b16 %v381, %v380
      %v397 = vpack.c.b16 %v383, %v382
      %v398 = vpack.c.b16 %v385, %v384
      %v399 = vpack.c.b16 %v387, %v386
      %vm412 = vcmask 523264
      %v414 = vsel %vm412, %v338, 0
      %416 = vmatprep.subr.bf16.mxu0 0
      %417 = vmatpush1.bf16.msra.mxu0 %v395
      %418 = vmatprep.subr.bf16.mxu0 0
      %419 = vmatpush1.bf16.msra.mxu0 %v394
      %420 = vmatprep.subr.bf16.mxu0 0
      %421 = vmatpush1.bf16.msra.mxu0 %v393
      %422 = vmatprep.subr.bf16.mxu0 0
      %423 = vmatpush1.bf16.msra.mxu0 %v392
      %424 = vmatprep.subr.bf16.mxu0 0
      %425 = vmatpush1.bf16.msra.mxu0 %v391
      %426 = vmatprep.subr.bf16.mxu0 0
      %427 = vmatpush1.bf16.msra.mxu0 %v390
      %428 = vmatprep.subr.bf16.mxu0 0
      %429 = vmatpush1.bf16.msra.mxu0 %v389
      %430 = vmatprep.subr.bf16.mxu0 0
      %431 = vmatpush1.bf16.msra.mxu0 %v388
      %432 = vmatprep.subr.bf16.mxu0 0
      %433 = vmatpush2.bf16.msra.mxu0 0
      %434 = vmatprep.subr.bf16.mxu0 0
      %435 = vmatpush2.bf16.msra.mxu0 0
      %436 = vmatprep.subr.bf16.mxu0 0
      %437 = vmatpush2.bf16.msra.mxu0 0
      %438 = vmatprep.subr.bf16.mxu0 0
      %439 = vmatpush2.bf16.msra.mxu0 0
      %440 = vmatprep.subr.bf16.mxu0 0
      %441 = vmatpush2.bf16.msra.mxu0 %v399
      %442 = vmatprep.subr.bf16.mxu0 0
      %443 = vmatpush2.bf16.msra.mxu0 %v398
      %444 = vmatprep.subr.bf16.mxu0 0
      %445 = vmatpush2.bf16.msra.mxu0 %v397
      %446 = vmatprep.subr.bf16.mxu0 0
      %447 = vmatpush2.bf16.msra.mxu0 %v396
      %448 = vmatprep.mubr.bf16.mxu0 %v414
      %449 = vmatmul.mubr.bf16.gmra.mxu0 %v337
      %v450 = vpop.f32.mrf.mxu0
      %v451 = vadd.f32 %v329, %v450
      %v452 = vpop.f32.mrf.mxu0
      %v453 = vpop.f32.mrf.mxu0
      %v454 = vadd.f32 %v329, %v453
      %v455 = vpop.f32.mrf.mxu0
      %456 = vdwg.mxu0
      %vm457 = vcmp.gt.f32.partialorder %v451, 0.0
      %vm458 = vcmp.gt.f32.partialorder %v454, 0.0
      %v459 = vmul.f32 %v451, 0.1
      %v460 = vmul.f32 %v454, 0.1
      %v461 = vsel %vm457, %v451, %v459
      %v462 = vsel %vm458, %v454, %v460
      %v463 = vpack.c.bf16 %v462, %v461
      %v465 = vunpack.c.l.b16 %v463
      %v466 = vunpack.c.h.b16 %v463
      %v467 = vpack.c.b16 %v465, %v465
      %v468 = vpack.c.b16 %v466, %v466
      %471 = vst [vmem:[#allocation3 + $0x4] sm:$0xf] %v467
      %472 = vst [vmem:[#allocation3 + $0x10] sm:$0xf] %v468
      %vm473 = vcmask 1040384
      %vm474 = vmand %vm473, %vm240
      %v475 = vld [vmem:[#allocation3] sm:$0x1]
      %v476 = vsel %vm474, 0, %v475
      %477 = vst [vmem:[#allocation3] sm:$0x1] %v476
      %v479 = vshrl.u32 %v467, 16
      %v481 = vrot.slane %v479, 7
      %v482 = vshll.u32 %v467, 16
      %v484 = vor.u32 %v481, %v482
      %v485 = vrot.slane %v481, 4
      %v487 = vshrl.u32 %v468, 16
      %v489 = vrot.slane %v487, 7
      %v490 = vshll.u32 %v468, 16
      %v492 = vor.u32 %v489, %v490
      %v493 = vsel %vm246, %v485, %v492
      %vm496 = vcmask 1043456
      %vm497 = vmand %vm496, %vm266
      %v498 = vld [vmem:[#allocation3] sm:$0xf]
      %v499 = vsel %vm497, %v484, %v498
      %500 = vst [vmem:[#allocation3] sm:$0xf] %v499
      %501 = vst [vmem:[#allocation3 + $0xc] sm:$0xf] %v493
      %v502 = vrot.slane %v479, 4
      %v503 = vrot.slane %v482, 5
      %v504 = vor.u32 %v502, %v503
      %v505 = vrot.slane %v504, 4
      %v506 = vrot.slane %v490, 5
      %v507 = vsel %vm275, %v505, %v506
      %v508 = vrot.slane %v487, 4
      %v509 = vor.u32 %v508, %v506
      %v510 = vrot.slane %v509, 4
      %513 = vst [vmem:[#allocation3 + $0x8] sm:$0xf] %v507
      %vm514 = vmand %vm496, %vm273
      %v515 = vld [vmem:[#allocation3 + $0x14] sm:$0xf]
      %v516 = vsel %vm514, %v510, %v515
      %517 = vst [vmem:[#allocation3 + $0x14] sm:$0xf] %v516
      %vm518 = vcmask 1043459
      %vm519 = vmand %vm518, %vm293
      %v520 = vld [vmem:[#allocation3 + $0x14] sm:$0x8]
      %v521 = vsel %vm519, 0, %v520
      %522 = vst [vmem:[#allocation3 + $0x14] sm:$0x8] %v521
      %v523 = vld [vmem:[#allocation3] sm:$0xff]
      %v524 = vld [vmem:[#allocation3 + $0x8] sm:$0xf]
      %v525 = vld [vmem:[#allocation3 + $0xc] sm:$0xff]
      %v526 = vld [vmem:[#allocation3 + $0x14] sm:$0xf]
      %v527 = vld [vmem:[%s3] sm:$0xf]
      %v528 = vld [vmem:[%s3 + $0x4] sm:$0xf]
      %v529 = vld [vmem:[%s3 + $0x8] sm:$0xf]
      %v530 = vld [vmem:[%s3 + $0xc] sm:$0xf]
      %v531 = vld [vmem:[%s3 + $0x10] sm:$0xf]
      %v532 = vld [vmem:[%s3 + $0x14] sm:$0xf]
      %v533 = vld [vmem:[%s3 + $0x18] sm:$0xf]
      %v534 = vld [vmem:[%s3 + $0x1c] sm:$0xf]
      %v535 = vld [vmem:[%s3 + $0x20] sm:$0xf]
      %v536 = vld [vmem:[%s3 + $0x24] sm:$0xf]
      %v537 = vld [vmem:[%s3 + $0x28] sm:$0xf]
      %v538 = vld [vmem:[%s3 + $0x2c] sm:$0xf]
      %v539 = vld [vmem:[%s3 + $0x30] sm:$0xf]
      %v540 = vld [vmem:[%s3 + $0x34] sm:$0xf]
      %v541 = vld [vmem:[%s3 + $0x38] sm:$0xf]
      %v542 = vld [vmem:[%s3 + $0x3c] sm:$0xf]
      %v543 = vld [vmem:[%s3 + $0x40] sm:$0xf]
      %v544 = vld [vmem:[%s3 + $0x44] sm:$0xf]
      %v545 = vld [vmem:[%s3 + $0x48] sm:$0xf]
      %v546 = vld [vmem:[%s3 + $0x4c] sm:$0xf]
      %v547 = vld [vmem:[%s3 + $0x50] sm:$0xf]
      %v548 = vld [vmem:[%s3 + $0x54] sm:$0xf]
      %v549 = vld [vmem:[%s3 + $0x58] sm:$0xf]
      %v550 = vld [vmem:[%s3 + $0x5c] sm:$0xf]
      %v551 = vld [vmem:[%s3 + $0x60] sm:$0xf]
      %v552 = vld [vmem:[%s3 + $0x64] sm:$0xf]
      %v553 = vld [vmem:[%s3 + $0x68] sm:$0xf]
      %v554 = vld [vmem:[%s3 + $0x6c] sm:$0xf]
      %v555 = vld [vmem:[%s3 + $0x70] sm:$0xf]
      %v556 = vld [vmem:[%s3 + $0x74] sm:$0xf]
      %v557 = vld [vmem:[%s3 + $0x78] sm:$0xf]
      %v558 = vld [vmem:[%s3 + $0x7c] sm:$0xf]
      %v559 = vld [vmem:[%s3 + $0x80] sm:$0xf]
      %v560 = vld [vmem:[%s3 + $0x84] sm:$0xf]
      %v561 = vld [vmem:[%s3 + $0x88] sm:$0xf]
      %v562 = vld [vmem:[%s3 + $0x8c] sm:$0xf]
      %v563 = vld [vmem:[%s3 + $0x90] sm:$0xf]
      %v564 = vld [vmem:[%s3 + $0x94] sm:$0xf]
      %v565 = vld [vmem:[%s3 + $0x98] sm:$0xf]
      %v566 = vld [vmem:[%s3 + $0x9c] sm:$0xf]
      %v567 = vld [vmem:[%s3 + $0xa0] sm:$0xf]
      %v568 = vld [vmem:[%s3 + $0xa4] sm:$0xf]
      %v569 = vld [vmem:[%s3 + $0xa8] sm:$0xf]
      %v570 = vld [vmem:[%s3 + $0xac] sm:$0xf]
      %v571 = vld [vmem:[%s3 + $0xb0] sm:$0xf]
      %v572 = vld [vmem:[%s3 + $0xb4] sm:$0xf]
      %v573 = vld [vmem:[%s3 + $0xb8] sm:$0xf]
      %v574 = vld [vmem:[%s3 + $0xbc] sm:$0xf]
      %v575 = vld [vmem:[%s4] sm:$0x1]
      %v577 = vlaneseq
      %v578 = vshrl.u32 %v577, 7
      %v579 = vsub.s32 0, %v578
      %v580 = vrot.slane %v575, %v579
      %v586 = vunpack.c.l.b16 %v523
      %v587 = vunpack.c.h.b16 %v523
      %v588 = vunpack.c.l.b16 %v524
      %v589 = vunpack.c.l.b16 %v525
      %v590 = vunpack.c.h.b16 %v525
      %v591 = vunpack.c.l.b16 %v526
      %v592 = vpack.c.b16 %v589, %v586
      %v593 = vpack.c.b16 %v590, %v587
      %v594 = vpack.c.b16 %v591, %v588
      %v646 = vunpack.c.l.b16 %v527
      %v647 = vunpack.c.l.b16 %v528
      %v648 = vunpack.c.l.b16 %v529
      %v649 = vunpack.c.l.b16 %v530
      %v650 = vunpack.c.l.b16 %v531
      %v651 = vunpack.c.l.b16 %v532
      %v652 = vunpack.c.l.b16 %v533
      %v653 = vunpack.c.l.b16 %v534
      %v654 = vunpack.c.l.b16 %v535
      %v655 = vunpack.c.l.b16 %v536
      %v656 = vunpack.c.l.b16 %v537
      %v657 = vunpack.c.l.b16 %v538
      %v658 = vunpack.c.l.b16 %v539
      %v659 = vunpack.c.l.b16 %v540
      %v660 = vunpack.c.l.b16 %v541
      %v661 = vunpack.c.l.b16 %v542
      %v662 = vunpack.c.l.b16 %v543
      %v663 = vunpack.c.l.b16 %v544
      %v664 = vunpack.c.l.b16 %v545
      %v665 = vunpack.c.l.b16 %v546
      %v666 = vunpack.c.l.b16 %v547
      %v667 = vunpack.c.l.b16 %v548
      %v668 = vunpack.c.l.b16 %v549
      %v669 = vunpack.c.l.b16 %v550
      %v670 = vunpack.c.l.b16 %v551
      %v671 = vunpack.c.l.b16 %v552
      %v672 = vunpack.c.l.b16 %v553
      %v673 = vunpack.c.l.b16 %v554
      %v674 = vunpack.c.l.b16 %v555
      %v675 = vunpack.c.l.b16 %v556
      %v676 = vunpack.c.l.b16 %v557
      %v677 = vunpack.c.l.b16 %v558
      %v678 = vunpack.c.l.b16 %v559
      %v679 = vunpack.c.l.b16 %v560
      %v680 = vunpack.c.l.b16 %v561
      %v681 = vunpack.c.l.b16 %v562
      %v682 = vunpack.c.l.b16 %v563
      %v683 = vunpack.c.l.b16 %v564
      %v684 = vunpack.c.l.b16 %v565
      %v685 = vunpack.c.l.b16 %v566
      %v686 = vunpack.c.l.b16 %v567
      %v687 = vunpack.c.l.b16 %v568
      %v688 = vunpack.c.l.b16 %v569
      %v689 = vunpack.c.l.b16 %v570
      %v690 = vunpack.c.l.b16 %v571
      %v691 = vunpack.c.l.b16 %v572
      %v692 = vunpack.c.l.b16 %v573
      %v693 = vunpack.c.l.b16 %v574
      %v694 = vpack.c.b16 %v647, %v646
      %v695 = vpack.c.b16 %v649, %v648
      %v696 = vpack.c.b16 %v651, %v650
      %v697 = vpack.c.b16 %v653, %v652
      %v698 = vpack.c.b16 %v655, %v654
      %v699 = vpack.c.b16 %v657, %v656
      %v700 = vpack.c.b16 %v659, %v658
      %v701 = vpack.c.b16 %v661, %v660
      %v702 = vpack.c.b16 %v663, %v662
      %v703 = vpack.c.b16 %v665, %v664
      %v704 = vpack.c.b16 %v667, %v666
      %v705 = vpack.c.b16 %v669, %v668
      %v706 = vpack.c.b16 %v671, %v670
      %v707 = vpack.c.b16 %v673, %v672
      %v708 = vpack.c.b16 %v675, %v674
      %v709 = vpack.c.b16 %v677, %v676
      %v710 = vpack.c.b16 %v679, %v678
      %v711 = vpack.c.b16 %v681, %v680
      %v712 = vpack.c.b16 %v683, %v682
      %v713 = vpack.c.b16 %v685, %v684
      %v714 = vpack.c.b16 %v687, %v686
      %v715 = vpack.c.b16 %v689, %v688
      %v716 = vpack.c.b16 %v691, %v690
      %v717 = vpack.c.b16 %v693, %v692
      %742 = vmatprep.subr.bf16.mxu0 0
      %743 = vmatpush1.bf16.msra.mxu0 %v701
      %744 = vmatprep.subr.bf16.mxu0 0
      %745 = vmatpush1.bf16.msra.mxu0 %v700
      %746 = vmatprep.subr.bf16.mxu0 0
      %747 = vmatpush1.bf16.msra.mxu0 %v699
      %748 = vmatprep.subr.bf16.mxu0 0
      %749 = vmatpush1.bf16.msra.mxu0 %v698
      %750 = vmatprep.subr.bf16.mxu0 0
      %751 = vmatpush1.bf16.msra.mxu0 %v697
      %752 = vmatprep.subr.bf16.mxu0 0
      %753 = vmatpush1.bf16.msra.mxu0 %v696
      %754 = vmatprep.subr.bf16.mxu0 0
      %755 = vmatpush1.bf16.msra.mxu0 %v695
      %756 = vmatprep.subr.bf16.mxu0 0
      %757 = vmatpush1.bf16.msra.mxu0 %v694
      %758 = vmatprep.subr.bf16.mxu0 0
      %759 = vmatpush2.bf16.msra.mxu0 %v709
      %760 = vmatprep.subr.bf16.mxu0 0
      %761 = vmatpush2.bf16.msra.mxu0 %v708
      %762 = vmatprep.subr.bf16.mxu0 0
      %763 = vmatpush2.bf16.msra.mxu0 %v707
      %764 = vmatprep.subr.bf16.mxu0 0
      %765 = vmatpush2.bf16.msra.mxu0 %v706
      %766 = vmatprep.subr.bf16.mxu0 0
      %767 = vmatpush2.bf16.msra.mxu0 %v705
      %768 = vmatprep.subr.bf16.mxu0 0
      %769 = vmatpush2.bf16.msra.mxu0 %v704
      %770 = vmatprep.subr.bf16.mxu0 0
      %771 = vmatpush2.bf16.msra.mxu0 %v703
      %772 = vmatprep.subr.bf16.mxu0 0
      %773 = vmatpush2.bf16.msra.mxu0 %v702
      %774 = vmatprep.mubr.bf16.mxu0 %v593
      %775 = vmatmul.mubr.bf16.gmra.mxu0 %v592
      %v776 = vpop.f32.mrf.mxu0
      %v777 = vadd.f32 %v580, %v776
      %v778 = vpop.f32.mrf.mxu0
      %v779 = vpop.f32.mrf.mxu0
      %v780 = vadd.f32 %v580, %v779
      %v781 = vpop.f32.mrf.mxu0
      %782 = vdwg.mxu0
      %783 = vmatprep.subr.bf16.mxu0 0
      %784 = vmatpush1.bf16.msra.mxu0 %v717
      %785 = vmatprep.subr.bf16.mxu0 0
      %786 = vmatpush1.bf16.msra.mxu0 %v716
      %787 = vmatprep.subr.bf16.mxu0 0
      %788 = vmatpush1.bf16.msra.mxu0 %v715
      %789 = vmatprep.subr.bf16.mxu0 0
      %790 = vmatpush1.bf16.msra.mxu0 %v714
      %791 = vmatprep.subr.bf16.mxu0 0
      %792 = vmatpush1.bf16.msra.mxu0 %v713
      %793 = vmatprep.subr.bf16.mxu0 0
      %794 = vmatpush1.bf16.msra.mxu0 %v712
      %795 = vmatprep.subr.bf16.mxu0 0
      %796 = vmatpush1.bf16.msra.mxu0 %v711
      %797 = vmatprep.subr.bf16.mxu0 0
      %798 = vmatpush1.bf16.msra.mxu0 %v710
      %799 = vmatprep.subr.bf16.mxu0 0
      %800 = vmatpush2.bf16.msra.mxu0 0
      %801 = vmatprep.subr.bf16.mxu0 0
      %802 = vmatpush2.bf16.msra.mxu0 0
      %803 = vmatprep.subr.bf16.mxu0 0
      %804 = vmatpush2.bf16.msra.mxu0 0
      %805 = vmatprep.subr.bf16.mxu0 0
      %806 = vmatpush2.bf16.msra.mxu0 0
      %807 = vmatprep.subr.bf16.mxu0 0
      %808 = vmatpush2.bf16.msra.mxu0 0
      %809 = vmatprep.subr.bf16.mxu0 0
      %810 = vmatpush2.bf16.msra.mxu0 0
      %811 = vmatprep.subr.bf16.mxu0 0
      %812 = vmatpush2.bf16.msra.mxu0 0
      %813 = vmatprep.subr.bf16.mxu0 0
      %814 = vmatpush2.bf16.msra.mxu0 0
      %815 = vmatprep.mubr.bf16.mxu0 0
      %816 = vmatmul.mubr.bf16.gmra.mxu0 %v594
      %v817 = vpop.f32.mrf.mxu0
      %v818 = vadd.f32 %v777, %v817
      %v819 = vpop.f32.mrf.mxu0
      %v820 = vpop.f32.mrf.mxu0
      %v821 = vadd.f32 %v780, %v820
      %v822 = vpop.f32.mrf.mxu0
      %823 = vdwg.mxu0
      %vm824 = vcmp.gt.f32.partialorder %v818, 0.0
      %vm825 = vcmp.gt.f32.partialorder %v821, 0.0
      %v826 = vmul.f32 %v818, 0.1
      %v827 = vmul.f32 %v821, 0.1
      %v828 = vsel %vm824, %v818, %v826
      %v829 = vsel %vm825, %v821, %v827
      %830 = vst [vmem:[%s224] sm:$0xff] %v828
      %831 = vst [vmem:[%s224 + $0x8] sm:$0xff] %v829
      %p832 = scmp.lt.s32.totalorder %s16, 1
      %s833 = scalar_select %p832, %s16, 1
      %s834 = smul.addr %s833, 2
      %s835 = smul.addr %s834, 8
      %s836 = scalar_lea.vmem %s5, %s835
      // Predicated region
      $region41: #{conv_block_forward.1} parent=39 // pred_check
        %p837 = pneg %p144
      $region42: #{conv_block_forward.1} parent=39 // pred_check_branch
        %839 = sbr.rel (%p837) target = $region44
      $region43: #{conv_block_forward.1} parent=39 // pred_region
        _
      $region44: #{conv_block_forward.1} parent=39 // pred_fallthru
        _
    $region40: #{conv_block_forward.1} parent=5 // pred_fallthru
      _
    %p840 = scmp.le.s32.totalorder 2, %s11
    // Predicated region
    $region45: #{conv_block_forward.1} parent=5 // pred_check
      %p841 = pneg %p840
    $region46: #{conv_block_forward.1} parent=5 // pred_check_branch
      %843 = sbr.rel (%p841) target = $region48
    $region47: #{conv_block_forward.1} parent=5 // pred_region
      %s844 = ssub.s32 %s11, 2
      // Predicated region
      $region49: #{conv_block_forward.1} parent=47 // pred_check
        %p845 = pneg %p150
      $region50: #{conv_block_forward.1} parent=47 // pred_check_branch
        %847 = sbr.rel (%p845) target = $region52
      $region51: #{conv_block_forward.1} parent=47 // pred_region
        %p848 = scmp.lt.s32.totalorder %s17, 1
        %s849 = scalar_select %p848, %s17, 1
        %s850 = smul.addr %s849, 2
        %s851 = smul.addr %s850, 8
        %s852 = scalar_lea.vmem %s5, %s851
      $region52: #{conv_block_forward.1} parent=47 // pred_fallthru
        _
    $region48: #{conv_block_forward.1} parent=5 // pred_fallthru
      _
  $region6: #{conv_block_forward.1} parent=0 // loop_footer
    %s15 = sadd.s32 1, %s11
  $region7: #{conv_block_forward.1} parent=0 // loop_footer_branch
    %10 = sbr.rel target = $region3
  $region8: #{conv_block_forward.1} parent=0 // loop_exit
    _

</llo_original>
